<compile_context>
chip_gen: v6e
topology: v6e:2x2x1
jax: 0.10.0
libtpu: 0.0.40
codegen_flags: <defaults>
</compile_context>

<pallas_src>
import functools

import jax
import jax.numpy as jnp
from jax import lax
from jax.experimental import pallas as pl
from jax.experimental.pallas import tpu as pltpu


def _round_up(x, m):
    return ((x + m - 1) // m) * m


def _pick_block_rows(batch, dim):
    """Largest power-of-two row tile (<= 512) whose double-buffered (TB, D)
    input blocks stay within ~24 MiB, leaving room for the D x D Gram block
    on v7x's 64 MiB VMEM (v5e/v6e have 128 MiB)."""
    tb = 512
    while tb > 8 and 2 * 2 * tb * dim * 4 > 24 * (1 << 20):
        tb //= 2
    return max(8, min(tb, _round_up(batch, 8)))


def _contrastive_loss_kernel(u_ref, c_ref, t_ref, scal_ref, gram_ref, *,
                             margin, batch, gram_in_bf16):
    core = pl.program_id(0)          # TensorCore split ("parallel" axis)
    step = pl.program_id(1)          # row-tile reduction ("arbitrary" axis)

    # Output blocks are resident across the reduction axis -> accumulators.
    @pl.when(step == 0)
    def _init():
        scal_ref[...] = jnp.zeros_like(scal_ref)
        gram_ref[...] = jnp.zeros_like(gram_ref)

    u = u_ref[...]                   # (TB, D) f32, already noised
    c = c_ref[...]                   # (TB, D) f32, already noised
    t = t_ref[...]                   # (TB, 1) f32, zero in padded rows

    tb = u.shape[0]
    tile_idx = core * pl.num_programs(1) + step
    row = tile_idx * tb + lax.broadcasted_iota(jnp.int32, (tb, 1), 0)
    valid = row < batch              # mask rows added only for tile padding

    # Per-row reductions over D; reused by cosine sim AND the L2 reg terms.
    u_sq = jnp.sum(u * u, axis=1, keepdims=True)    # (TB, 1)
    c_sq = jnp.sum(c * c, axis=1, keepdims=True)    # (TB, 1)
    uc = jnp.sum(u * c, axis=1, keepdims=True)      # (TB, 1)

    # F.cosine_similarity(u, c, dim=1) with eps = 1e-8 (clamp each norm).
    eps = jnp.float32(1e-8)
    denom = jnp.maximum(jnp.sqrt(u_sq), eps) * jnp.maximum(jnp.sqrt(c_sq), eps)
    cos = uc / denom
    pos = jnp.maximum(jnp.float32(margin) - cos, 0.0)

    zero = jnp.zeros_like(cos)
    sum_t = jnp.sum(t)                                       # pads are 0
    sum_cos2 = jnp.sum(jnp.where(valid, cos * cos, zero))
    sum_pos2 = jnp.sum(jnp.where(valid, pos * pos, zero))
    sum_u_sq = jnp.sum(u_sq)                                  # pads are 0
    sum_c_sq = jnp.sum(c_sq)

    # Pack the five partial scalars into lanes 0..4 of the (1, 1, 128) block.
    lane = lax.broadcasted_iota(jnp.int32, scal_ref.shape, 2)
    packed = (jnp.where(lane == 0, sum_t, 0.0)
              + jnp.where(lane == 1, sum_cos2, 0.0)
              + jnp.where(lane == 2, sum_pos2, 0.0)
              + jnp.where(lane == 3, sum_u_sq, 0.0)
              + jnp.where(lane == 4, sum_c_sq, 0.0))
    scal_ref[...] += packed.astype(jnp.float32)

    # Partial Gram C_tile^T C_tile (D x D): contract the batch axis, no
    # explicit transpose, no B x B tensor.  Optional bf16 MXU operands with
    # f32 accumulation (error confined to the lambda_orthog * 1e-3 term).
    cg = c.astype(jnp.bfloat16) if gram_in_bf16 else c
    gram_ref[...] += lax.dot_general(
        cg, cg, dimension_numbers=(((0,), (0,)), ((), ())),
        preferred_element_type=jnp.float32)


def _add_noise(u, c, noise_factor, key):
    ku, kc = jax.random.split(key)
    u = u + jnp.float32(noise_factor) * jax.random.normal(ku, u.shape, jnp.float32)
    c = c + jnp.float32(noise_factor) * jax.random.normal(kc, c.shape, jnp.float32)
    return u, c


def contrastive_loss(user_embedding, content_embedding, targets, *,
                     margin=1.0, lambda_reg=0.01, lambda_orthog=0.001,
                     noise_factor=0.0005, noise_key=None,
                     gram_in_bf16=True, block_rows=None, num_cores=1):
    """Pallas TPU implementation of ContrastiveLoss.forward (returns scalar f32).

    num_cores: set to 2 on v7x (2 TensorCores/chip); each core reduces half of
    the row tiles and a tiny JAX epilogue combines the per-core partials.
    """
    u = jnp.asarray(user_embedding, jnp.float32)
    c = jnp.asarray(content_embedding, jnp.float32)
    b, d = u.shape
    t = jnp.reshape(jnp.asarray(targets, jnp.float32), (b, 1))

    if noise_factor:
        key = noise_key if noise_key is not None else jax.random.PRNGKey(0)
        u, c = _add_noise(u, c, noise_factor, key)

    nc = max(1, int(num_cores))
    tb = _round_up(int(block_rows), 8) if block_rows else _pick_block_rows(b, d)
    b_pad = _round_up(b, tb * nc)
    if b_pad != b:
        u = jnp.pad(u, ((0, b_pad - b), (0, 0)))
        c = jnp.pad(c, ((0, b_pad - b), (0, 0)))
        t = jnp.pad(t, ((0, b_pad - b), (0, 0)))
    tiles_per_core = (b_pad // tb) // nc

    kernel = functools.partial(
        _contrastive_loss_kernel, margin=float(margin), batch=int(b),
        gram_in_bf16=bool(gram_in_bf16))

    # VMEM budget: double-buffered (TB, D) input blocks + D x D Gram block.
    est = 2 * 2 * tb * d * 4 + 2 * d * d * 4 + 2 * tb * 128 * 4 + 2 * 128 * 4
    vmem_limit = int(max(32 << 20, min(100 << 20, 2 * est + (8 << 20))))

    scal_parts, gram_parts = pl.pallas_call(
        kernel,
        out_shape=(jax.ShapeDtypeStruct((nc, 1, 128), jnp.float32),
                   jax.ShapeDtypeStruct((nc, d, d), jnp.float32)),
        grid_spec=pltpu.PrefetchScalarGridSpec(
            num_scalar_prefetch=0,
            grid=(nc, tiles_per_core),
            in_specs=[
                pl.BlockSpec((tb, d), lambda cc, i: (cc * tiles_per_core + i, 0)),
                pl.BlockSpec((tb, d), lambda cc, i: (cc * tiles_per_core + i, 0)),
                pl.BlockSpec((tb, 1), lambda cc, i: (cc * tiles_per_core + i, 0)),
            ],
            out_specs=(
                pl.BlockSpec((1, 1, 128), lambda cc, i: (cc, 0, 0)),
                pl.BlockSpec((1, d, d), lambda cc, i: (cc, 0, 0)),
            )),
        compiler_params=pltpu.CompilerParams(
            dimension_semantics=("parallel", "arbitrary"),
            vmem_limit_bytes=vmem_limit),
    )(u, c, t)

    # Tiny JAX epilogue: combine per-core partials (a few O(D^2) ops).
    scal = jnp.sum(scal_parts, axis=0)[0]          # (128,)
    gram = jnp.sum(gram_parts, axis=0)             # (D, D) = C^T C
    sum_t, sum_cos2, sum_pos2 = scal[0], scal[1], scal[2]
    sum_u_sq, sum_c_sq = scal[3], scal[4]

    b_f = jnp.float32(b)
    # PyTorch broadcast semantics: (B,1) targets x (B,) cosine -> (B,B) mean,
    # factorized exactly as (1 - mean_t) * mean(cos^2) + mean_t * mean(pos^2).
    mean_t = sum_t / b_f
    loss_contrastive = (1.0 - mean_t) * (sum_cos2 / b_f) + mean_t * (sum_pos2 / b_f)
    # torch.norm(x, p=2) over the whole (noised) tensors.
    regularization_loss = jnp.sqrt(sum_u_sq) + jnp.sqrt(sum_c_sq)
    # ||C C^T - I||_F via sum((C^T C)^2) - 2 tr(C^T C) + B; the trace is taken
    # from the same (possibly bf16-sourced) Gram for precision consistency.
    ortho_sq = jnp.sum(gram * gram) - 2.0 * jnp.trace(gram) + b_f
    ortho_reg = jnp.sqrt(jnp.maximum(ortho_sq, 0.0))

    return (loss_contrastive
            + jnp.float32(lambda_reg) * regularization_loss
            + jnp.float32(lambda_orthog) * ortho_reg)


def calculate_targets(engagement_type, engagement_value):
    """JAX mirror of ContrastiveLoss.calculate_targets (glue, not hot path)."""
    DISLIKE, LIKE = 0.0, 1.0
    return jnp.where(
        engagement_type == DISLIKE, jnp.zeros_like(engagement_type),
        jnp.where(
            engagement_type == LIKE, jnp.ones_like(engagement_type),
            jnp.where(engagement_value % 2 == 0,
                      jnp.zeros_like(engagement_type),
                      jnp.ones_like(engagement_type))))


if __name__ == "__main__":
    root = jax.random.PRNGKey(0)
    keys = jax.random.split(root, 6)

    def reference(u, c, t, margin=1.0, lambda_reg=0.01, lambda_orthog=0.001):
        eps = 1e-8
        cos = (jnp.sum(u * c, axis=1) /
               (jnp.maximum(jnp.linalg.norm(u, axis=1), eps) *
                jnp.maximum(jnp.linalg.norm(c, axis=1), eps)))          # (B,)
        # PyTorch broadcast: (B,1) targets vs (B,) cosine -> (B,B) before mean.
        lc = jnp.mean((1 - t) * cos ** 2
                      + t * jnp.maximum(margin - cos, 0.0) ** 2)
        reg = jnp.linalg.norm(u) + jnp.linalg.norm(c)
        ortho = jnp.linalg.norm(c @ c.T - jnp.eye(c.shape[0]))
        return lc + lambda_reg * reg + lambda_orthog * ortho

    def make_case(b, d, k):
        ku, kc, ket, kev = jax.random.split(k, 4)
        u = jax.random.normal(ku, (b, d), jnp.float32)
        c = jax.random.normal(kc, (b, d), jnp.float32)
        et = jax.random.randint(ket, (b, 1), 0, 3).astype(jnp.float32)
        ev = jax.random.randint(kev, (b, 1), 0, 10).astype(jnp.float32)
        return u, c, calculate_targets(et, ev)

    nf = 0.0005

    # Case 1: small batch (B=10 exercises the padded / masked tail), 1 core,
    # exact f32 Gram.  Noise is host-reproducible, so the check is exact.
    u1, c1, t1 = make_case(10, 128, keys[0])
    loss1 = contrastive_loss(u1, c1, t1, noise_factor=nf, noise_key=keys[1],
                             gram_in_bf16=False, num_cores=1)
    un1, cn1 = _add_noise(u1, c1, nf, keys[1])
    ref1 = reference(un1, cn1, t1)
    jax.block_until_ready(loss1)
    assert jnp.allclose(loss1, ref1, rtol=1e-5, atol=1e-5), (loss1, ref1)

    # Case 2: multi-tile reduction + 2-TensorCore split layout (v7x), f32 Gram.
    u2, c2, t2 = make_case(48, 128, keys[2])
    loss2 = contrastive_loss(u2, c2, t2, noise_factor=nf, noise_key=keys[3],
                             gram_in_bf16=False, block_rows=8, num_cores=2)
    un2, cn2 = _add_noise(u2, c2, nf, keys[3])
    ref2 = reference(un2, cn2, t2)
    jax.block_until_ready(loss2)
    assert jnp.allclose(loss2, ref2, rtol=1e-5, atol=1e-5), (loss2, ref2)

    # Case 3: production defaults (bf16 MXU operands for the Gram term only);
    # the error is confined to the lambda_orthog = 1e-3 scale term.
    loss3 = contrastive_loss(u2, c2, t2, noise_factor=nf, noise_key=keys[3],
                             num_cores=2)
    jax.block_until_ready(loss3)
    assert jnp.allclose(loss3, ref2, rtol=1e-2, atol=2e-2), (loss3, ref2)

    print("KERNEL_OK")
</pallas_src>

<mosaic_0001>
module attributes {stable_mosaic.version = 11 : i64} {
  func.func @_contrastive_loss_kernel(%arg0: i32, %arg1: i32, %arg2: memref<16x128xf32, #tpu.memory_space<vmem>>, %arg3: memref<16x128xf32, #tpu.memory_space<vmem>>, %arg4: memref<16x1xf32, #tpu.memory_space<vmem>>, %arg5: memref<1x1x128xf32, #tpu.memory_space<vmem>>, %arg6: memref<1x128x128xf32, #tpu.memory_space<vmem>>) attributes {dimension_semantics = [#tpu.dimension_semantics<parallel>, #tpu.dimension_semantics<arbitrary>], iteration_bounds = array<i64: 1, 1>, scalar_prefetch = 0 : i64, scratch_operands = 0 : i64, tpu.core_type = #tpu.core_type<tc>, window_params = [{transform_indices = @transform_0, window_bounds = array<i64: 16, 128>}, {transform_indices = @transform_1, window_bounds = array<i64: 16, 128>}, {transform_indices = @transform_2, window_bounds = array<i64: 16, 1>}, {transform_indices = @transform_3, window_bounds = array<i64: 1, 1, 128>}, {transform_indices = @transform_4, window_bounds = array<i64: 1, 128, 128>}]} {
    %c0_i32 = arith.constant 0 : i32
    %0 = arith.cmpi eq, %arg1, %c0_i32 : i32
    %1 = arith.extui %0 : i1 to i32
    %c0_i32_0 = arith.constant 0 : i32
    %2 = arith.cmpi ne, %1, %c0_i32_0 : i32
    scf.if %2 {
      %cst_38 = arith.constant 0.000000e+00 : f32
      %98 = vector.broadcast %cst_38 : f32 to vector<1x1x128xf32>
      %c0_39 = arith.constant 0 : index
      %c0_40 = arith.constant 0 : index
      %c0_41 = arith.constant 0 : index
      %99 = vector.load %arg5[%c0_39, %c0_40, %c0_41] : memref<1x1x128xf32, #tpu.memory_space<vmem>>, vector<1x1x128xf32>
      tpu.vector_store %arg5[%c0_39, %c0_40, %c0_41], %98 {strides = array<i32>} : memref<1x1x128xf32, #tpu.memory_space<vmem>>, vector<1x1x128xf32>,
      %cst_42 = arith.constant 0.000000e+00 : f32
      %100 = vector.broadcast %cst_42 : f32 to vector<1x128x128xf32>
      %c0_43 = arith.constant 0 : index
      %c0_44 = arith.constant 0 : index
      %c0_45 = arith.constant 0 : index
      %101 = vector.load %arg6[%c0_43, %c0_44, %c0_45] : memref<1x128x128xf32, #tpu.memory_space<vmem>>, vector<1x128x128xf32>
      tpu.vector_store %arg6[%c0_43, %c0_44, %c0_45], %100 {strides = array<i32>} : memref<1x128x128xf32, #tpu.memory_space<vmem>>, vector<1x128x128xf32>,
    } else {
    }
    %c0 = arith.constant 0 : index
    %c0_1 = arith.constant 0 : index
    %3 = vector.load %arg2[%c0, %c0_1] : memref<16x128xf32, #tpu.memory_space<vmem>>, vector<16x128xf32>
    %c0_2 = arith.constant 0 : index
    %c0_3 = arith.constant 0 : index
    %4 = vector.load %arg3[%c0_2, %c0_3] : memref<16x128xf32, #tpu.memory_space<vmem>>, vector<16x128xf32>
    %c0_4 = arith.constant 0 : index
    %c0_5 = arith.constant 0 : index
    %5 = vector.load %arg4[%c0_4, %c0_5] : memref<16x1xf32, #tpu.memory_space<vmem>>, vector<16x1xf32>
    %c1_i32 = arith.constant 1 : i32
    %6 = arith.muli %arg0, %c1_i32 : i32
    %7 = arith.addi %6, %arg1 : i32
    %c16_i32 = arith.constant 16 : i32
    %8 = arith.muli %7, %c16_i32 : i32
    %9 = tpu.iota {dimensions = array<i32: 0>} : vector<16x1xi32>
    %10 = vector.broadcast %8 : i32 to vector<16x1xi32>
    %11 = arith.addi %10, %9 : vector<16x1xi32>
    %c10_i32 = arith.constant 10 : i32
    %12 = vector.broadcast %c10_i32 : i32 to vector<16x1xi32>
    %13 = arith.cmpi slt, %11, %12 : vector<16x1xi32>
    %14 = arith.mulf %3, %3 : vector<16x128xf32>
    %cst = arith.constant dense<0.000000e+00> : vector<16xf32>
    %15 = vector.multi_reduction <add>, %14, %cst [1] : vector<16x128xf32> to vector<16xf32>
    %16 = vector.shape_cast %15 : vector<16xf32> to vector<16x1xf32>
    %17 = arith.mulf %4, %4 : vector<16x128xf32>
    %cst_6 = arith.constant dense<0.000000e+00> : vector<16xf32>
    %18 = vector.multi_reduction <add>, %17, %cst_6 [1] : vector<16x128xf32> to vector<16xf32>
    %19 = vector.shape_cast %18 : vector<16xf32> to vector<16x1xf32>
    %20 = arith.mulf %3, %4 : vector<16x128xf32>
    %cst_7 = arith.constant dense<0.000000e+00> : vector<16xf32>
    %21 = vector.multi_reduction <add>, %20, %cst_7 [1] : vector<16x128xf32> to vector<16xf32>
    %22 = vector.shape_cast %21 : vector<16xf32> to vector<16x1xf32>
    %23 = math.sqrt %16 : vector<16x1xf32>
    %cst_8 = arith.constant 9.99999993E-9 : f32
    %24 = vector.broadcast %cst_8 : f32 to vector<16x1xf32>
    %25 = arith.maximumf %23, %24 : vector<16x1xf32>
    %26 = math.sqrt %19 : vector<16x1xf32>
    %cst_9 = arith.constant 9.99999993E-9 : f32
    %27 = vector.broadcast %cst_9 : f32 to vector<16x1xf32>
    %28 = arith.maximumf %26, %27 : vector<16x1xf32>
    %29 = arith.mulf %25, %28 : vector<16x1xf32>
    %30 = arith.divf %22, %29 : vector<16x1xf32>
    %cst_10 = arith.constant 1.000000e+00 : f32
    %31 = vector.broadcast %cst_10 : f32 to vector<16x1xf32>
    %32 = arith.subf %31, %30 : vector<16x1xf32>
    %cst_11 = arith.constant 0.000000e+00 : f32
    %33 = vector.broadcast %cst_11 : f32 to vector<16x1xf32>
    %34 = arith.maximumf %32, %33 : vector<16x1xf32>
    %cst_12 = arith.constant 0.000000e+00 : f32
    %35 = vector.broadcast %cst_12 : f32 to vector<16x1xf32>
    %36 = vector.shape_cast %5 : vector<16x1xf32> to vector<1x16x1xf32>
    %cst_13 = arith.constant dense<0.000000e+00> : vector<1xf32>
    %37 = vector.multi_reduction <add>, %36, %cst_13 [1, 2] : vector<1x16x1xf32> to vector<1xf32>
    %38 = vector.shape_cast %37 : vector<1xf32> to vector<1x1x1xf32>
    %39 = vector.extract %38[0, 0, 0] : f32 from vector<1x1x1xf32>
    %40 = arith.mulf %30, %30 : vector<16x1xf32>
    %41 = arith.select %13, %40, %35 : vector<16x1xi1>, vector<16x1xf32>
    %42 = vector.shape_cast %41 : vector<16x1xf32> to vector<1x16x1xf32>
    %cst_14 = arith.constant dense<0.000000e+00> : vector<1xf32>
    %43 = vector.multi_reduction <add>, %42, %cst_14 [1, 2] : vector<1x16x1xf32> to vector<1xf32>
    %44 = vector.shape_cast %43 : vector<1xf32> to vector<1x1x1xf32>
    %45 = vector.extract %44[0, 0, 0] : f32 from vector<1x1x1xf32>
    %46 = arith.mulf %34, %34 : vector<16x1xf32>
    %47 = arith.select %13, %46, %35 : vector<16x1xi1>, vector<16x1xf32>
    %48 = vector.shape_cast %47 : vector<16x1xf32> to vector<1x16x1xf32>
    %cst_15 = arith.constant dense<0.000000e+00> : vector<1xf32>
    %49 = vector.multi_reduction <add>, %48, %cst_15 [1, 2] : vector<1x16x1xf32> to vector<1xf32>
    %50 = vector.shape_cast %49 : vector<1xf32> to vector<1x1x1xf32>
    %51 = vector.extract %50[0, 0, 0] : f32 from vector<1x1x1xf32>
    %52 = vector.shape_cast %16 : vector<16x1xf32> to vector<1x16x1xf32>
    %cst_16 = arith.constant dense<0.000000e+00> : vector<1xf32>
    %53 = vector.multi_reduction <add>, %52, %cst_16 [1, 2] : vector<1x16x1xf32> to vector<1xf32>
    %54 = vector.shape_cast %53 : vector<1xf32> to vector<1x1x1xf32>
    %55 = vector.extract %54[0, 0, 0] : f32 from vector<1x1x1xf32>
    %56 = vector.shape_cast %19 : vector<16x1xf32> to vector<1x16x1xf32>
    %cst_17 = arith.constant dense<0.000000e+00> : vector<1xf32>
    %57 = vector.multi_reduction <add>, %56, %cst_17 [1, 2] : vector<1x16x1xf32> to vector<1xf32>
    %58 = vector.shape_cast %57 : vector<1xf32> to vector<1x1x1xf32>
    %59 = vector.extract %58[0, 0, 0] : f32 from vector<1x1x1xf32>
    %60 = tpu.iota {dimensions = array<i32: 2>} : vector<1x1x128xi32>
    %c0_i32_18 = arith.constant 0 : i32
    %61 = vector.broadcast %c0_i32_18 : i32 to vector<1x1x128xi32>
    %62 = arith.cmpi eq, %60, %61 : vector<1x1x128xi32>
    %cst_19 = arith.constant 0.000000e+00 : f32
    %63 = vector.broadcast %39 : f32 to vector<1x1x128xf32>
    %64 = vector.broadcast %cst_19 : f32 to vector<1x1x128xf32>
    %65 = arith.select %62, %63, %64 : vector<1x1x128xi1>, vector<1x1x128xf32>
    %c1_i32_20 = arith.constant 1 : i32
    %66 = vector.broadcast %c1_i32_20 : i32 to vector<1x1x128xi32>
    %67 = arith.cmpi eq, %60, %66 : vector<1x1x128xi32>
    %cst_21 = arith.constant 0.000000e+00 : f32
    %68 = vector.broadcast %45 : f32 to vector<1x1x128xf32>
    %69 = vector.broadcast %cst_21 : f32 to vector<1x1x128xf32>
    %70 = arith.select %67, %68, %69 : vector<1x1x128xi1>, vector<1x1x128xf32>
    %71 = arith.addf %65, %70 : vector<1x1x128xf32>
    %c2_i32 = arith.constant 2 : i32
    %72 = vector.broadcast %c2_i32 : i32 to vector<1x1x128xi32>
    %73 = arith.cmpi eq, %60, %72 : vector<1x1x128xi32>
    %cst_22 = arith.constant 0.000000e+00 : f32
    %74 = vector.broadcast %51 : f32 to vector<1x1x128xf32>
    %75 = vector.broadcast %cst_22 : f32 to vector<1x1x128xf32>
    %76 = arith.select %73, %74, %75 : vector<1x1x128xi1>, vector<1x1x128xf32>
    %77 = arith.addf %71, %76 : vector<1x1x128xf32>
    %c3_i32 = arith.constant 3 : i32
    %78 = vector.broadcast %c3_i32 : i32 to vector<1x1x128xi32>
    %79 = arith.cmpi eq, %60, %78 : vector<1x1x128xi32>
    %cst_23 = arith.constant 0.000000e+00 : f32
    %80 = vector.broadcast %55 : f32 to vector<1x1x128xf32>
    %81 = vector.broadcast %cst_23 : f32 to vector<1x1x128xf32>
    %82 = arith.select %79, %80, %81 : vector<1x1x128xi1>, vector<1x1x128xf32>
    %83 = arith.addf %77, %82 : vector<1x1x128xf32>
    %c4_i32 = arith.constant 4 : i32
    %84 = vector.broadcast %c4_i32 : i32 to vector<1x1x128xi32>
    %85 = arith.cmpi eq, %60, %84 : vector<1x1x128xi32>
    %cst_24 = arith.constant 0.000000e+00 : f32
    %86 = vector.broadcast %59 : f32 to vector<1x1x128xf32>
    %87 = vector.broadcast %cst_24 : f32 to vector<1x1x128xf32>
    %88 = arith.select %85, %86, %87 : vector<1x1x128xi1>, vector<1x1x128xf32>
    %89 = arith.addf %83, %88 : vector<1x1x128xf32>
    %c0_25 = arith.constant 0 : index
    %c0_26 = arith.constant 0 : index
    %c0_27 = arith.constant 0 : index
    %90 = vector.load %arg5[%c0_25, %c0_26, %c0_27] : memref<1x1x128xf32, #tpu.memory_space<vmem>>, vector<1x1x128xf32>
    %91 = arith.addf %90, %89 : vector<1x1x128xf32>
    %c0_28 = arith.constant 0 : index
    %c0_29 = arith.constant 0 : index
    %c0_30 = arith.constant 0 : index
    %92 = vector.load %arg5[%c0_28, %c0_29, %c0_30] : memref<1x1x128xf32, #tpu.memory_space<vmem>>, vector<1x1x128xf32>
    tpu.vector_store %arg5[%c0_28, %c0_29, %c0_30], %91 {strides = array<i32>} : memref<1x1x128xf32, #tpu.memory_space<vmem>>, vector<1x1x128xf32>,
    %c0_31 = arith.constant 0 : index
    %c0_32 = arith.constant 0 : index
    %c0_33 = arith.constant 0 : index
    %93 = vector.load %arg6[%c0_31, %c0_32, %c0_33] : memref<1x128x128xf32, #tpu.memory_space<vmem>>, vector<1x128x128xf32>
    %cst_34 = arith.constant dense<0.000000e+00> : vector<128x128xf32>
    %94 = tpu.matmul %4, %4, %cst_34 {dimension_numbers = #tpu.dot_dimension_numbers<[0], [0], [1], [1], [0, 1, 1, 1], [], []>} : vector<16x128xf32>, vector<16x128xf32>, vector<128x128xf32> -> vector<128x128xf32>
    %95 = vector.shape_cast %94 : vector<128x128xf32> to vector<1x128x128xf32>
    %96 = arith.addf %93, %95 : vector<1x128x128xf32>
    %c0_35 = arith.constant 0 : index
    %c0_36 = arith.constant 0 : index
    %c0_37 = arith.constant 0 : index
    %97 = vector.load %arg6[%c0_35, %c0_36, %c0_37] : memref<1x128x128xf32, #tpu.memory_space<vmem>>, vector<1x128x128xf32>
    tpu.vector_store %arg6[%c0_35, %c0_36, %c0_37], %96 {strides = array<i32>} : memref<1x128x128xf32, #tpu.memory_space<vmem>>, vector<1x128x128xf32>,
    return
  }
  func.func @transform_0(%arg0: i32, %arg1: i32) -> (i32, i32) {
    %c1_i32 = arith.constant 1 : i32
    %0 = arith.muli %arg0, %c1_i32 : i32
    %1 = arith.addi %0, %arg1 : i32
    %c0_i32 = arith.constant 0 : i32
    %c0_i32_0 = arith.constant 0 : i32
    return %1, %c0_i32 : i32, i32
  }
  func.func @transform_1(%arg0: i32, %arg1: i32) -> (i32, i32) {
    %c1_i32 = arith.constant 1 : i32
    %0 = arith.muli %arg0, %c1_i32 : i32
    %1 = arith.addi %0, %arg1 : i32
    %c0_i32 = arith.constant 0 : i32
    %c0_i32_0 = arith.constant 0 : i32
    return %1, %c0_i32 : i32, i32
  }
  func.func @transform_2(%arg0: i32, %arg1: i32) -> (i32, i32) {
    %c1_i32 = arith.constant 1 : i32
    %0 = arith.muli %arg0, %c1_i32 : i32
    %1 = arith.addi %0, %arg1 : i32
    %c0_i32 = arith.constant 0 : i32
    %c0_i32_0 = arith.constant 0 : i32
    return %1, %c0_i32 : i32, i32
  }
  func.func @transform_3(%arg0: i32, %arg1: i32) -> (i32, i32, i32) {
    %c0_i32 = arith.constant 0 : i32
    %c0_i32_0 = arith.constant 0 : i32
    %c0_i32_1 = arith.constant 0 : i32
    return %arg0, %c0_i32, %c0_i32_0 : i32, i32, i32
  }
  func.func @transform_4(%arg0: i32, %arg1: i32) -> (i32, i32, i32) {
    %c0_i32 = arith.constant 0 : i32
    %c0_i32_0 = arith.constant 0 : i32
    %c0_i32_1 = arith.constant 0 : i32
    return %arg0, %c0_i32, %c0_i32_0 : i32, i32, i32
  }
}

</mosaic_0001>

<llo_original>
// kernel: tpu_custom_call.1
$region0: #{tpu_custom_call.1}
  #allocation0 [shape = 'u32[]', space=smem, size = 0x4, offset = 0x4, fixed_abs, tag = 'smem constant byte address 0x4 - core index']
  #allocation1 [shape = 'u32[144,128]{1,0:T(1,128)}', space=vmem, size = 0x12000, scoped, tag = 'internal scratch']
  %s0 = inlined_call_operand.vmem [shape: f32[16,128], index: 0, kind: input, shape index: {}]
  %s1 = inlined_call_operand.hbm [shape: f32[16,128], index: 1, kind: input, shape index: {}]
  %s2 = inlined_call_operand.vmem [shape: f32[16,1], index: 2, kind: input, shape index: {}]
  %s3 = inlined_call_operand.hbm [shape: f32[1,1,128], index: 3, kind: output, shape index: {0}]
  %s4 = inlined_call_operand.hbm [shape: f32[1,128,128], index: 4, kind: output, shape index: {1}]
  %5 = xla_tuple %s3, %s4
  %s6 = sld [smem:[#allocation0]]
  $region38: #{tpu_custom_call.1} parent=0
    _
  %s8 = ssub.s32 1, %s6
  %s9 = scalar_select 0, %s8, %s6
  $region1: #{tpu_custom_call.1} parent=0
    #allocation2 [shape = 'u8[8192]{0}', space=vmem, size = 0x2000, scoped, tag = 'input window, operand 1, single buffered']
    #allocation3 [shape = 's32[1]{0}', space=sflag, size = 0x4, scoped, tag = 'scoped memory for tpu_custom_call.1']
    #allocation4 [shape = 's32[1]{0}', space=sflag, size = 0x4, scoped, tag = 'scoped memory for tpu_custom_call.1']
    #allocation5 [shape = 'u8[512]{0}', space=vmem, size = 0x400, scoped, tag = 'output window, operand 0, single buffered']
    #allocation6 [shape = 'u8[65536]{0}', space=vmem, size = 0x10000, scoped, tag = 'output window, operand 1, single buffered']
    #allocation7 [shape = 's32[1]{0}', space=sflag, size = 0x4, scoped, tag = 'scoped memory for tpu_custom_call.1']
    %10 = vsyncpa [#allocation3], 0
    %11 = vsyncpa [#allocation4], 0
    %12 = vsyncpa [#allocation7], 0
    // Predicated region
    $region2: #{tpu_custom_call.1} parent=1 // pred_check
      _
    $region3: #{tpu_custom_call.1} parent=1 // pred_check_branch
      %14 = sbr.rel (0) target = $region5
    $region4: #{tpu_custom_call.1} parent=1 // pred_region
      %s15 = sadd.s32 0, 0
      %s16 = smul.u32 2, %s15
      %p17 = scmp.lt.s32.totalorder %s16, 1
      %s18 = scalar_select %p17, %s16, 1
      %s19 = smul.addr %s18, 8
      %s20 = scalar_lea.vmem %s0, %s19
      %s21 = sadd.s32 0, 0
      %s22 = smul.u32 2, %s21
    $region5: #{tpu_custom_call.1} parent=1 // pred_fallthru
      _
    // Predicated region
    $region6: #{tpu_custom_call.1} parent=1 // pred_check
      _
    $region7: #{tpu_custom_call.1} parent=1 // pred_check_branch
      %24 = sbr.rel (0) target = $region9
    $region8: #{tpu_custom_call.1} parent=1 // pred_region
      %s25 = sadd.s32 0, 0
      %s26 = smul.u32 2, %s25
      %s28 = ssub.s32 256, 256
      %29 = vsyncadd [#allocation3], %s28
      %s30 = smul.addr %s26, 128
      %s31 = scalar_lea.hbm %s1, %s30
      %s32 = sshll.u32 [#allocation2], 4
      %s33 = int_to_ptr.vmem [resolvable:$true] %s32
      %38 = dma.hbm_to_vmem [thread:$0]  %s31, 256, %s33, [#allocation3], 128, 128, 8
    $region9: #{tpu_custom_call.1} parent=1 // pred_fallthru
      _
    // Predicated region
    $region10: #{tpu_custom_call.1} parent=1 // pred_check
      _
    $region11: #{tpu_custom_call.1} parent=1 // pred_check_branch
      %40 = sbr.rel (0) target = $region13
    $region12: #{tpu_custom_call.1} parent=1 // pred_region
      %s41 = sadd.s32 0, 0
      %s42 = smul.u32 2, %s41
      %p43 = scmp.lt.s32.totalorder %s42, 1
      %s44 = scalar_select %p43, %s42, 1
      %s45 = smul.addr %s44, 8
      %s46 = scalar_lea.vmem %s2, %s45
      %s47 = sadd.s32 0, 0
      %s48 = smul.u32 2, %s47
    $region13: #{tpu_custom_call.1} parent=1 // pred_fallthru
      _
    // Predicated region
    $region14: #{tpu_custom_call.1} parent=1 // pred_check
      _
    $region15: #{tpu_custom_call.1} parent=1 // pred_check_branch
      %50 = sbr.rel (0) target = $region17
    $region16: #{tpu_custom_call.1} parent=1 // pred_region
      %51 = dma.done [#allocation3], 256
    $region17: #{tpu_custom_call.1} parent=1 // pred_fallthru
      _
    %s52 = sadd.s32 0, 0
    %s53 = smul.u32 2, %s52
    %p54 = scmp.lt.s32.totalorder %s53, 1
    %s55 = scalar_select %p54, %s53, 1
    %s56 = smul.addr %s55, 8
    %s57 = scalar_lea.vmem %s0, %s56
    %s58 = sadd.s32 0, 0
    %s59 = smul.u32 2, %s58
    %p60 = scmp.lt.s32.totalorder %s59, 1
    %s61 = scalar_select %p60, %s59, 1
    %s62 = smul.addr %s61, 8
    %s63 = scalar_lea.vmem %s2, %s62
    %s64 = sadd.s32 0, 0
    %s65 = smul.u32 2, %s64
    %p66 = scmp.lt.s32.totalorder %s65, 1
    %s67 = scalar_select %p66, %s65, 1
    %s68 = smul.addr %s67, 8
    %s69 = scalar_lea.vmem %s0, %s68
    %s70 = sadd.s32 0, 0
    %s71 = smul.u32 2, %s70
    %s72 = sadd.s32 0, 0
    %s73 = smul.u32 2, %s72
    %s74 = sadd.s32 0, 0
    %s75 = smul.u32 2, %s74
    %p76 = scmp.lt.s32.totalorder %s75, 1
    %s77 = scalar_select %p76, %s75, 1
    %s78 = smul.addr %s77, 8
    %s79 = scalar_lea.vmem %s2, %s78
    %s80 = sadd.s32 0, 0
    %s81 = smul.u32 2, %s80
    %p82 = scmp.eq.s32.totalorder 0, 0
    // Predicated region
    $region18: #{tpu_custom_call.1} parent=1 // pred_check
      %p83 = pneg %p82
    $region19: #{tpu_custom_call.1} parent=1 // pred_check_branch
      %85 = sbr.rel (%p83) target = $region21
    $region20: #{tpu_custom_call.1} parent=1 // pred_region
      %86 = vst [vmem:[#allocation5] sm:$0x1] 0.0
      %87 = vst [vmem:[#allocation6] sm:$0xff] 0.0
      %88 = vst [vmem:[#allocation6 + $0x8] sm:$0xff] 0.0
      %89 = vst [vmem:[#allocation6 + $0x10] sm:$0xff] 0.0
      %90 = vst [vmem:[#allocation6 + $0x18] sm:$0xff] 0.0
      %91 = vst [vmem:[#allocation6 + $0x20] sm:$0xff] 0.0
      %92 = vst [vmem:[#allocation6 + $0x28] sm:$0xff] 0.0
      %93 = vst [vmem:[#allocation6 + $0x30] sm:$0xff] 0.0
      %94 = vst [vmem:[#allocation6 + $0x38] sm:$0xff] 0.0
      %95 = vst [vmem:[#allocation6 + $0x40] sm:$0xff] 0.0
      %96 = vst [vmem:[#allocation6 + $0x48] sm:$0xff] 0.0
      %97 = vst [vmem:[#allocation6 + $0x50] sm:$0xff] 0.0
      %98 = vst [vmem:[#allocation6 + $0x58] sm:$0xff] 0.0
      %99 = vst [vmem:[#allocation6 + $0x60] sm:$0xff] 0.0
      %100 = vst [vmem:[#allocation6 + $0x68] sm:$0xff] 0.0
      %101 = vst [vmem:[#allocation6 + $0x70] sm:$0xff] 0.0
      %102 = vst [vmem:[#allocation6 + $0x78] sm:$0xff] 0.0
    $region21: #{tpu_custom_call.1} parent=1 // pred_fallthru
      _
    %v103 = vld [vmem:[%s69] sm:$0xff]
    %v104 = vld [vmem:[%s69 + $0x8] sm:$0xff]
    %v105 = vld [vmem:[#allocation2] sm:$0xff]
    %v106 = vld [vmem:[#allocation2 + $0x8] sm:$0xff]
    %v107 = vld [vmem:[%s79] sm:$0xff]
    %v108 = vld [vmem:[%s79 + $0x8] sm:$0xff]
    %s109 = sadd.s32 0, 0
    %s110 = smul.u32 %s109, 16
    %v111 = vlaneseq
    %v112 = vshrl.u32 %v111, 7
    %v113 = vadd.s32 %v112, 8
    %v114 = vstv %s110
    %v115 = vadd.s32 %v114, %v112
    %v116 = vadd.s32 %v114, %v113
    %vm117 = vcmp.lt.s32.totalorder %v115, 10
    %vm118 = vcmp.lt.s32.totalorder %v116, 10
    %v119 = vmul.f32 %v103, %v103
    %v120 = vmul.f32 %v104, %v104
    %121 = vadd.xlane.f32.xlu0 %v119
    %v122 = vpop.xlane.xlu0 %121
    %123 = vadd.xlane.f32.xlu0 %v120
    %v124 = vpop.xlane.xlu0 %123
    %v125 = vmul.f32 %v105, %v105
    %v126 = vmul.f32 %v106, %v106
    %127 = vadd.xlane.f32.xlu0 %v125
    %v128 = vpop.xlane.xlu0 %127
    %129 = vadd.xlane.f32.xlu0 %v126
    %v130 = vpop.xlane.xlu0 %129
    %v131 = vmul.f32 %v103, %v105
    %v132 = vmul.f32 %v104, %v106
    %133 = vadd.xlane.f32.xlu0 %v131
    %v134 = vpop.xlane.xlu0 %133
    %135 = vadd.xlane.f32.xlu0 %v132
    %v136 = vpop.xlane.xlu0 %135
    %v137 = vrsqrt.pop %v122
    %v138 = vmul.f32 %v122, %v137
    %vm139 = vcmp.eq.f32.partialorder %v122, inf
    %v140 = vsel %vm139, %v122, %v138
    %vm141 = vcmp.eq.f32.partialorder %v122, 0.0
    %v142 = vand.u32 %v122, 2147483648
    %v143 = vsel %vm141, %v142, %v140
    %v144 = vrsqrt.pop %v124
    %v145 = vmul.f32 %v124, %v144
    %vm146 = vcmp.eq.f32.partialorder %v124, inf
    %v147 = vsel %vm146, %v124, %v145
    %vm148 = vcmp.eq.f32.partialorder %v124, 0.0
    %v149 = vand.u32 %v124, 2147483648
    %v150 = vsel %vm148, %v149, %v147
    %v151 = vmax.f32 %v143, 1e-08
    %v152 = vmax.f32 %v150, 1e-08
    %v153 = vrsqrt.pop %v128
    %v154 = vmul.f32 %v128, %v153
    %vm155 = vcmp.eq.f32.partialorder %v128, inf
    %v156 = vsel %vm155, %v128, %v154
    %vm157 = vcmp.eq.f32.partialorder %v128, 0.0
    %v158 = vand.u32 %v128, 2147483648
    %v159 = vsel %vm157, %v158, %v156
    %v160 = vrsqrt.pop %v130
    %v161 = vmul.f32 %v130, %v160
    %vm162 = vcmp.eq.f32.partialorder %v130, inf
    %v163 = vsel %vm162, %v130, %v161
    %vm164 = vcmp.eq.f32.partialorder %v130, 0.0
    %v165 = vand.u32 %v130, 2147483648
    %v166 = vsel %vm164, %v165, %v163
    %v167 = vmax.f32 %v159, 1e-08
    %v168 = vmax.f32 %v166, 1e-08
    %v169 = vmul.f32 %v151, %v167
    %v170 = vmul.f32 %v152, %v168
    %v171 = vrcp.pop %v169
    %v172 = vmul.f32 %v134, %v171
    %v173 = vrcp.pop %v170
    %v174 = vmul.f32 %v136, %v173
    %v175 = vsub.f32 1.0, %v172
    %v176 = vsub.f32 1.0, %v174
    %v177 = vmax.f32 %v175, 0.0
    %v178 = vmax.f32 %v176, 0.0
    %vm179 = vcmask 7168
    %v180 = vsel %vm179, %v107, 0.0
    %v181 = vsel %vm179, %v108, 0.0
    %v182 = vadd.f32 %v180, %v181
    %183 = vadd.xlane.f32.xlu0 %v182
    %v184 = vpop.xlane.xlu0 %183
    %v185 = vrot.slane %v184, 4
    %v186 = vadd.f32 %v184, %v185
    %v187 = vrot.slane %v186, 2
    %v188 = vadd.f32 %v186, %v187
    %v189 = vrot.slane %v188, 1
    %v190 = vadd.f32 %v188, %v189
    %s191 = vtos %v190
    %v192 = vmul.f32 %v172, %v172
    %v193 = vmul.f32 %v174, %v174
    %v194 = vsel %vm117, %v192, 0.0
    %v195 = vsel %vm118, %v193, 0.0
    %v196 = vsel %vm179, %v194, 0.0
    %v197 = vsel %vm179, %v195, 0.0
    %v198 = vadd.f32 %v196, %v197
    %199 = vadd.xlane.f32.xlu0 %v198
    %v200 = vpop.xlane.xlu0 %199
    %v201 = vrot.slane %v200, 4
    %v202 = vadd.f32 %v200, %v201
    %v203 = vrot.slane %v202, 2
    %v204 = vadd.f32 %v202, %v203
    %v205 = vrot.slane %v204, 1
    %v206 = vadd.f32 %v204, %v205
    %s207 = vtos %v206
    %v208 = vmul.f32 %v177, %v177
    %v209 = vmul.f32 %v178, %v178
    %v210 = vsel %vm117, %v208, 0.0
    %v211 = vsel %vm118, %v209, 0.0
    %v212 = vsel %vm179, %v210, 0.0
    %v213 = vsel %vm179, %v211, 0.0
    %v214 = vadd.f32 %v212, %v213
    %215 = vadd.xlane.f32.xlu0 %v214
    %v216 = vpop.xlane.xlu0 %215
    %v217 = vrot.slane %v216, 4
    %v218 = vadd.f32 %v216, %v217
    %v219 = vrot.slane %v218, 2
    %v220 = vadd.f32 %v218, %v219
    %v221 = vrot.slane %v220, 1
    %v222 = vadd.f32 %v220, %v221
    %s223 = vtos %v222
    %v224 = vsel %vm179, %v122, 0.0
    %v225 = vsel %vm179, %v124, 0.0
    %v226 = vadd.f32 %v224, %v225
    %227 = vadd.xlane.f32.xlu0 %v226
    %v228 = vpop.xlane.xlu0 %227
    %v229 = vrot.slane %v228, 4
    %v230 = vadd.f32 %v228, %v229
    %v231 = vrot.slane %v230, 2
    %v232 = vadd.f32 %v230, %v231
    %v233 = vrot.slane %v232, 1
    %v234 = vadd.f32 %v232, %v233
    %s235 = vtos %v234
    %v236 = vsel %vm179, %v128, 0.0
    %v237 = vsel %vm179, %v130, 0.0
    %v238 = vadd.f32 %v236, %v237
    %239 = vadd.xlane.f32.xlu0 %v238
    %v240 = vpop.xlane.xlu0 %239
    %v241 = vrot.slane %v240, 4
    %v242 = vadd.f32 %v240, %v241
    %v243 = vrot.slane %v242, 2
    %v244 = vadd.f32 %v242, %v243
    %v245 = vrot.slane %v244, 1
    %v246 = vadd.f32 %v244, %v245
    %s247 = vtos %v246
    %v248 = vlaneseq
    %v249 = vand.u32 %v248, 127
    %vm250 = vcmp.eq.s32.totalorder %v249, 0
    %v251 = vstv %s191
    %v252 = vsel %vm250, %v251, 0.0
    %vm253 = vcmp.eq.s32.totalorder %v249, 1
    %v254 = vstv %s207
    %v255 = vsel %vm253, %v254, 0.0
    %v256 = vadd.f32 %v252, %v255
    %vm257 = vcmp.eq.s32.totalorder %v249, 2
    %v258 = vstv %s223
    %v259 = vsel %vm257, %v258, 0.0
    %v260 = vadd.f32 %v256, %v259
    %vm261 = vcmp.eq.s32.totalorder %v249, 3
    %v262 = vstv %s235
    %v263 = vsel %vm261, %v262, 0.0
    %v264 = vadd.f32 %v260, %v263
    %vm265 = vcmp.eq.s32.totalorder %v249, 4
    %v266 = vstv %s247
    %v267 = vsel %vm265, %v266, 0.0
    %v268 = vadd.f32 %v264, %v267
    %v269 = vld [vmem:[#allocation5] sm:$0x1]
    %v270 = vadd.f32 %v269, %v268
    %271 = vst [vmem:[#allocation5] sm:$0x1] %v270
    %v272 = vld [vmem:[#allocation6] sm:$0xff]
    %v273 = vld [vmem:[#allocation6 + $0x8] sm:$0xff]
    %v274 = vld [vmem:[#allocation6 + $0x10] sm:$0xff]
    %v275 = vld [vmem:[#allocation6 + $0x18] sm:$0xff]
    %v276 = vld [vmem:[#allocation6 + $0x20] sm:$0xff]
    %v277 = vld [vmem:[#allocation6 + $0x28] sm:$0xff]
    %v278 = vld [vmem:[#allocation6 + $0x30] sm:$0xff]
    %v279 = vld [vmem:[#allocation6 + $0x38] sm:$0xff]
    %v280 = vld [vmem:[#allocation6 + $0x40] sm:$0xff]
    %v281 = vld [vmem:[#allocation6 + $0x48] sm:$0xff]
    %v282 = vld [vmem:[#allocation6 + $0x50] sm:$0xff]
    %v283 = vld [vmem:[#allocation6 + $0x58] sm:$0xff]
    %v284 = vld [vmem:[#allocation6 + $0x60] sm:$0xff]
    %v285 = vld [vmem:[#allocation6 + $0x68] sm:$0xff]
    %v286 = vld [vmem:[#allocation6 + $0x70] sm:$0xff]
    %v287 = vld [vmem:[#allocation6 + $0x78] sm:$0xff]
    %288 = vxpose.xlu0.b32.start [1/16] %v105, 128
    %289 = vxpose.xlu0.b32.cont [2/16] %v106, 128
    %290 = vxpose.xlu0.b32.cont [3/16] 0.0, 128
    %291 = vxpose.xlu0.b32.cont [4/16] 0.0, 128
    %292 = vxpose.xlu0.b32.cont [5/16] 0.0, 128
    %293 = vxpose.xlu0.b32.cont [6/16] 0.0, 128
    %294 = vxpose.xlu0.b32.cont [7/16] 0.0, 128
    %295 = vxpose.xlu0.b32.cont [8/16] 0.0, 128
    %296 = vxpose.xlu0.b32.cont [9/16] 0.0, 128
    %297 = vxpose.xlu0.b32.cont [10/16] 0.0, 128
    %298 = vxpose.xlu0.b32.cont [11/16] 0.0, 128
    %299 = vxpose.xlu0.b32.cont [12/16] 0.0, 128
    %300 = vxpose.xlu0.b32.cont [13/16] 0.0, 128
    %301 = vxpose.xlu0.b32.cont [14/16] 0.0, 128
    %302 = vxpose.xlu0.b32.cont [15/16] 0.0, 128
    %303 = vxpose.xlu0.b32.end [16/16] 0.0, 128
    %v304 = vpop.trf.xlu0
    %v305 = vpop.trf.xlu0
    %v306 = vpop.trf.xlu0
    %v307 = vpop.trf.xlu0
    %v308 = vpop.trf.xlu0
    %v309 = vpop.trf.xlu0
    %v310 = vpop.trf.xlu0
    %v311 = vpop.trf.xlu0
    %v312 = vpop.trf.xlu0
    %v313 = vpop.trf.xlu0
    %v314 = vpop.trf.xlu0
    %v315 = vpop.trf.xlu0
    %v316 = vpop.trf.xlu0
    %v317 = vpop.trf.xlu0
    %v318 = vpop.trf.xlu0
    %v319 = vpop.trf.xlu0
    %vm320 = vcmask 130048
    %v322 = vsel %vm320, %v304, 0
    %v325 = vsel %vm320, %v305, 0
    %v328 = vsel %vm320, %v306, 0
    %v331 = vsel %vm320, %v307, 0
    %v334 = vsel %vm320, %v308, 0
    %v337 = vsel %vm320, %v309, 0
    %v340 = vsel %vm320, %v310, 0
    %v343 = vsel %vm320, %v311, 0
    %v346 = vsel %vm320, %v312, 0
    %v349 = vsel %vm320, %v313, 0
    %v352 = vsel %vm320, %v314, 0
    %v355 = vsel %vm320, %v315, 0
    %v358 = vsel %vm320, %v316, 0
    %v361 = vsel %vm320, %v317, 0
    %v364 = vsel %vm320, %v318, 0
    %v367 = vsel %vm320, %v319, 0
    %369 = vmatprep.subr.mxu0 0.0
    %370 = vmatpush1.msra.mxu0 0.0
    %371 = vmatprep.subr.mxu0 0.0
    %372 = vmatpush1.msra.mxu0 0.0
    %373 = vmatprep.subr.mxu0 0.0
    %374 = vmatpush1.msra.mxu0 0.0
    %375 = vmatprep.subr.mxu0 0.0
    %376 = vmatpush1.msra.mxu0 0.0
    %377 = vmatprep.subr.mxu0 0.0
    %378 = vmatpush1.msra.mxu0 0.0
    %379 = vmatprep.subr.mxu0 0.0
    %380 = vmatpush1.msra.mxu0 0.0
    %381 = vmatprep.subr.mxu0 0.0
    %382 = vmatpush1.msra.mxu0 0.0
    %383 = vmatprep.subr.mxu0 0.0
    %384 = vmatpush1.msra.mxu0 0.0
    %385 = vmatprep.subr.mxu0 0.0
    %386 = vmatpush1.msra.mxu0 0.0
    %387 = vmatprep.subr.mxu0 0.0
    %388 = vmatpush1.msra.mxu0 0.0
    %389 = vmatprep.subr.mxu0 0.0
    %390 = vmatpush1.msra.mxu0 0.0
    %391 = vmatprep.subr.mxu0 0.0
    %392 = vmatpush1.msra.mxu0 0.0
    %393 = vmatprep.subr.mxu0 0.0
    %394 = vmatpush1.msra.mxu0 0.0
    %395 = vmatprep.subr.mxu0 0.0
    %396 = vmatpush1.msra.mxu0 0.0
    %397 = vmatprep.subr.mxu0 0.0
    %398 = vmatpush1.msra.mxu0 %v106
    %399 = vmatprep.subr.mxu0 0.0
    %400 = vmatpush1.msra.mxu0 %v105
    %401 = vmatprep.subr.mxu0 0.0
    %402 = vmatpush2.msra.mxu0 0.0
    %403 = vmatprep.subr.mxu0 0.0
    %404 = vmatpush2.msra.mxu0 0.0
    %405 = vmatprep.subr.mxu0 0.0
    %406 = vmatpush2.msra.mxu0 0.0
    %407 = vmatprep.subr.mxu0 0.0
    %408 = vmatpush2.msra.mxu0 0.0
    %409 = vmatprep.subr.mxu0 0.0
    %410 = vmatpush2.msra.mxu0 0.0
    %411 = vmatprep.subr.mxu0 0.0
    %412 = vmatpush2.msra.mxu0 0.0
    %413 = vmatprep.subr.mxu0 0.0
    %414 = vmatpush2.msra.mxu0 0.0
    %415 = vmatprep.subr.mxu0 0.0
    %416 = vmatpush2.msra.mxu0 0.0
    %417 = vmatprep.subr.mxu0 0.0
    %418 = vmatpush2.msra.mxu0 0.0
    %419 = vmatprep.subr.mxu0 0.0
    %420 = vmatpush2.msra.mxu0 0.0
    %421 = vmatprep.subr.mxu0 0.0
    %422 = vmatpush2.msra.mxu0 0.0
    %423 = vmatprep.subr.mxu0 0.0
    %424 = vmatpush2.msra.mxu0 0.0
    %425 = vmatprep.subr.mxu0 0.0
    %426 = vmatpush2.msra.mxu0 0.0
    %427 = vmatprep.subr.mxu0 0.0
    %428 = vmatpush2.msra.mxu0 0.0
    %429 = vmatprep.subr.mxu0 0.0
    %430 = vmatpush2.msra.mxu0 0.0
    %431 = vmatprep.subr.mxu0 0.0
    %432 = vmatpush2.msra.mxu0 0.0
    %433 = vmatprep.mubr.f32.mxu0 0.0
    %434 = vmatmul.mubr.f32.gmra.mxu0 %v322
    %v435 = vpop.f32.mrf.mxu0
    %v436 = vadd.f32 0.0, %v435
    %v437 = vpop.f32.mrf.mxu0
    %438 = vmatprep.mubr.f32.mxu0 0.0
    %439 = vmatmul.mubr.f32.gmra.mxu0 %v325
    %v440 = vpop.f32.mrf.mxu0
    %v441 = vadd.f32 0.0, %v440
    %v442 = vpop.f32.mrf.mxu0
    %443 = vmatprep.mubr.f32.mxu0 0.0
    %444 = vmatmul.mubr.f32.gmra.mxu0 %v328
    %v445 = vpop.f32.mrf.mxu0
    %v446 = vadd.f32 0.0, %v445
    %v447 = vpop.f32.mrf.mxu0
    %448 = vmatprep.mubr.f32.mxu0 0.0
    %449 = vmatmul.mubr.f32.gmra.mxu0 %v331
    %v450 = vpop.f32.mrf.mxu0
    %v451 = vadd.f32 0.0, %v450
    %v452 = vpop.f32.mrf.mxu0
    %453 = vmatprep.mubr.f32.mxu0 0.0
    %454 = vmatmul.mubr.f32.gmra.mxu0 %v334
    %v455 = vpop.f32.mrf.mxu0
    %v456 = vadd.f32 0.0, %v455
    %v457 = vpop.f32.mrf.mxu0
    %458 = vmatprep.mubr.f32.mxu0 0.0
    %459 = vmatmul.mubr.f32.gmra.mxu0 %v337
    %v460 = vpop.f32.mrf.mxu0
    %v461 = vadd.f32 0.0, %v460
    %v462 = vpop.f32.mrf.mxu0
    %463 = vmatprep.mubr.f32.mxu0 0.0
    %464 = vmatmul.mubr.f32.gmra.mxu0 %v340
    %v465 = vpop.f32.mrf.mxu0
    %v466 = vadd.f32 0.0, %v465
    %v467 = vpop.f32.mrf.mxu0
    %468 = vmatprep.mubr.f32.mxu0 0.0
    %469 = vmatmul.mubr.f32.gmra.mxu0 %v343
    %v470 = vpop.f32.mrf.mxu0
    %v471 = vadd.f32 0.0, %v470
    %v472 = vpop.f32.mrf.mxu0
    %473 = vmatprep.mubr.f32.mxu0 0.0
    %474 = vmatmul.mubr.f32.gmra.mxu0 %v346
    %v475 = vpop.f32.mrf.mxu0
    %v476 = vadd.f32 0.0, %v475
    %v477 = vpop.f32.mrf.mxu0
    %478 = vmatprep.mubr.f32.mxu0 0.0
    %479 = vmatmul.mubr.f32.gmra.mxu0 %v349
    %v480 = vpop.f32.mrf.mxu0
    %v481 = vadd.f32 0.0, %v480
    %v482 = vpop.f32.mrf.mxu0
    %483 = vmatprep.mubr.f32.mxu0 0.0
    %484 = vmatmul.mubr.f32.gmra.mxu0 %v352
    %v485 = vpop.f32.mrf.mxu0
    %v486 = vadd.f32 0.0, %v485
    %v487 = vpop.f32.mrf.mxu0
    %488 = vmatprep.mubr.f32.mxu0 0.0
    %489 = vmatmul.mubr.f32.gmra.mxu0 %v355
    %v490 = vpop.f32.mrf.mxu0
    %v491 = vadd.f32 0.0, %v490
    %v492 = vpop.f32.mrf.mxu0
    %493 = vmatprep.mubr.f32.mxu0 0.0
    %494 = vmatmul.mubr.f32.gmra.mxu0 %v358
    %v495 = vpop.f32.mrf.mxu0
    %v496 = vadd.f32 0.0, %v495
    %v497 = vpop.f32.mrf.mxu0
    %498 = vmatprep.mubr.f32.mxu0 0.0
    %499 = vmatmul.mubr.f32.gmra.mxu0 %v361
    %v500 = vpop.f32.mrf.mxu0
    %v501 = vadd.f32 0.0, %v500
    %v502 = vpop.f32.mrf.mxu0
    %503 = vmatprep.mubr.f32.mxu0 0.0
    %504 = vmatmul.mubr.f32.gmra.mxu0 %v364
    %v505 = vpop.f32.mrf.mxu0
    %v506 = vadd.f32 0.0, %v505
    %v507 = vpop.f32.mrf.mxu0
    %508 = vmatprep.mubr.f32.mxu0 0.0
    %509 = vmatmul.mubr.f32.gmra.mxu0 %v367
    %v510 = vpop.f32.mrf.mxu0
    %v511 = vadd.f32 0.0, %v510
    %v512 = vpop.f32.mrf.mxu0
    %513 = vdwg.mxu0
    %v514 = vadd.f32 %v272, %v436
    %v515 = vadd.f32 %v273, %v441
    %v516 = vadd.f32 %v274, %v446
    %v517 = vadd.f32 %v275, %v451
    %v518 = vadd.f32 %v276, %v456
    %v519 = vadd.f32 %v277, %v461
    %v520 = vadd.f32 %v278, %v466
    %v521 = vadd.f32 %v279, %v471
    %v522 = vadd.f32 %v280, %v476
    %v523 = vadd.f32 %v281, %v481
    %v524 = vadd.f32 %v282, %v486
    %v525 = vadd.f32 %v283, %v491
    %v526 = vadd.f32 %v284, %v496
    %v527 = vadd.f32 %v285, %v501
    %v528 = vadd.f32 %v286, %v506
    %v529 = vadd.f32 %v287, %v511
    %530 = vst [vmem:[#allocation6] sm:$0xff] %v514
    %531 = vst [vmem:[#allocation6 + $0x8] sm:$0xff] %v515
    %532 = vst [vmem:[#allocation6 + $0x10] sm:$0xff] %v516
    %533 = vst [vmem:[#allocation6 + $0x18] sm:$0xff] %v517
    %534 = vst [vmem:[#allocation6 + $0x20] sm:$0xff] %v518
    %535 = vst [vmem:[#allocation6 + $0x28] sm:$0xff] %v519
    %536 = vst [vmem:[#allocation6 + $0x30] sm:$0xff] %v520
    %537 = vst [vmem:[#allocation6 + $0x38] sm:$0xff] %v521
    %538 = vst [vmem:[#allocation6 + $0x40] sm:$0xff] %v522
    %539 = vst [vmem:[#allocation6 + $0x48] sm:$0xff] %v523
    %540 = vst [vmem:[#allocation6 + $0x50] sm:$0xff] %v524
    %541 = vst [vmem:[#allocation6 + $0x58] sm:$0xff] %v525
    %542 = vst [vmem:[#allocation6 + $0x60] sm:$0xff] %v526
    %543 = vst [vmem:[#allocation6 + $0x68] sm:$0xff] %v527
    %544 = vst [vmem:[#allocation6 + $0x70] sm:$0xff] %v528
    %545 = vst [vmem:[#allocation6 + $0x78] sm:$0xff] %v529
    // Predicated region
    $region22: #{tpu_custom_call.1} parent=1 // pred_check
      _
    $region23: #{tpu_custom_call.1} parent=1 // pred_check_branch
      %547 = sbr.rel (0) target = $region25
    $region24: #{tpu_custom_call.1} parent=1 // pred_region
      %s549 = ssub.s32 16, 16
      %550 = vsyncadd [#allocation4], %s549
      %s552 = sshll.u32 [#allocation5], 4
      %s553 = int_to_ptr.vmem [resolvable:$true] %s552
      %555 = dma.vmem_to_hbm [thread:$0]  %s553, 16, %s3, [#allocation4]
    $region25: #{tpu_custom_call.1} parent=1 // pred_fallthru
      _
    // Predicated region
    $region26: #{tpu_custom_call.1} parent=1 // pred_check
      _
    $region27: #{tpu_custom_call.1} parent=1 // pred_check_branch
      %557 = sbr.rel (0) target = $region29
    $region28: #{tpu_custom_call.1} parent=1 // pred_region
      %s559 = ssub.s32 2048, 2048
      %560 = vsyncadd [#allocation7], %s559
      %s561 = sshll.u32 [#allocation6], 4
      %s562 = int_to_ptr.vmem [resolvable:$true] %s561
      %567 = dma.vmem_to_hbm [thread:$0]  %s562, 2048, %s4, [#allocation7], 128, 128, 8
    $region29: #{tpu_custom_call.1} parent=1 // pred_fallthru
      _
    // Predicated region
    $region30: #{tpu_custom_call.1} parent=1 // pred_check
      _
    $region31: #{tpu_custom_call.1} parent=1 // pred_check_branch
      %569 = sbr.rel (0) target = $region33
    $region32: #{tpu_custom_call.1} parent=1 // pred_region
      %570 = dma.done [#allocation4], 16
    $region33: #{tpu_custom_call.1} parent=1 // pred_fallthru
      _
    // Predicated region
    $region34: #{tpu_custom_call.1} parent=1 // pred_check
      _
    $region35: #{tpu_custom_call.1} parent=1 // pred_check_branch
      %572 = sbr.rel (0) target = $region37
    $region36: #{tpu_custom_call.1} parent=1 // pred_region
      %573 = dma.done [#allocation7], 2048
    $region37: #{tpu_custom_call.1} parent=1 // pred_fallthru
      _
    %574 = vsyncpa [#allocation3], 1
    %575 = vsyncpa [#allocation4], 1
    %576 = vsyncpa [#allocation7], 1

</llo_original>
